<compile_context>
chip_gen: v7x
topology: tpu7x:2x2x1
jax: 0.10.0
libtpu: 0.0.40
codegen_flags: <defaults>
</compile_context>

<pallas_src>
import functools

import jax
import jax.numpy as jnp
from jax.experimental import pallas as pl
from jax.experimental.pallas import tpu as pltpu

_MAX_LANES = 1024  # widest lane-dense view we try (multiple of 128)


@functools.lru_cache(maxsize=None)
def _device_kind():
    try:
        return jax.devices()[0].device_kind.lower()
    except Exception:
        return ""


def _max_block_bytes():
    # 2 MiB on v5e and older (4 buffers in flight must stay under the 16 MiB
    # scoped-VMEM default); 4 MiB on v6e/v7x (16 MiB in flight < 32 MiB default).
    kind = _device_kind()
    if any(v in kind for v in ("v2", "v3", "v4", "v5")):
        return 2 * 1024 * 1024
    return 4 * 1024 * 1024


def _num_tensorcores():
    # v7x has 2 TensorCores per chip; earlier generations have 1.
    return 2 if "7" in _device_kind() else 1


def _sublane_multiple(dtype):
    # Sub-32-bit dtypes pack along sublanes: 8 (f32) / 16 (bf16) / 32 (int8).
    return max(8, 32 // jnp.dtype(dtype).itemsize)


def _h_swish_kernel(x_ref, o_ref):
    x = x_ref[...].astype(jnp.float32)
    hsig = jnp.clip(x + 3.0, 0.0, 6.0) * (1.0 / 6.0)
    o_ref[...] = (x * hsig).astype(o_ref.dtype)


def _h_swish_2d(x2d, block_rows, lanes):
    rows = x2d.shape[0]
    grid = (pl.cdiv(rows, block_rows),)
    return pl.pallas_call(
        _h_swish_kernel,
        out_shape=jax.ShapeDtypeStruct(x2d.shape, x2d.dtype),
        grid=grid,
        in_specs=[pl.BlockSpec((block_rows, lanes), lambda i: (i, 0))],
        out_specs=pl.BlockSpec((block_rows, lanes), lambda i: (i, 0)),
        compiler_params=pltpu.CompilerParams(
            dimension_semantics=("parallel",)),
    )(x2d)


def _choose_block_rows(rows, lanes, itemsize, sublane):
    """Equal-sized, sublane-aligned blocks; TC-balanced grid for large arrays."""
    bytes_per_row = lanes * itemsize
    max_block_rows = max(
        sublane, (_max_block_bytes() // bytes_per_row) // sublane * sublane)
    num_blocks = pl.cdiv(rows, max_block_rows)

    # Only force a multi-step / core-balanced grid when (a) running on a
    # multi-TC part and (b) the tensor is big enough (>= ~512 KiB) that the
    # ~0.35 us/step fixed overhead is negligible.
    n_cores = _num_tensorcores()
    if n_cores > 1 and rows * bytes_per_row >= 512 * 1024:
        num_blocks = max(num_blocks, n_cores)
        num_blocks = pl.cdiv(num_blocks, n_cores) * n_cores

    # Equalize block sizes (no nearly-empty runt edge block).
    block_rows = pl.cdiv(pl.cdiv(rows, num_blocks), sublane) * sublane
    return min(block_rows, rows)


def _h_swish_flat(flat):
    """Hard-swish over a 1-D array whose length is a multiple of 128."""
    n = flat.shape[0]
    lanes = _MAX_LANES
    while n % lanes != 0:
        lanes //= 2
    rows = n // lanes
    itemsize = jnp.dtype(flat.dtype).itemsize
    block_rows = _choose_block_rows(rows, lanes, itemsize,
                                    _sublane_multiple(flat.dtype))
    return _h_swish_2d(flat.reshape(rows, lanes), block_rows, lanes).reshape(-1)


def _h_swish_jnp(x):
    x32 = x.astype(jnp.float32)
    return (x32 * (jnp.clip(x32 + 3.0, 0.0, 6.0) * (1.0 / 6.0))).astype(x.dtype)


def h_swish(x):
    """Hard-swish: x * relu6(x + 3) / 6.  Elementwise, any shape, dtype kept."""
    orig_shape = x.shape
    n = x.size
    if n == 0:
        return x

    flat = jnp.ravel(x)
    tail = n % 128
    bulk = n - tail

    if bulk == 0:
        # Tiny (< 128 element) input: not worth a kernel launch.
        return _h_swish_jnp(flat).reshape(orig_shape)

    if tail == 0:
        return _h_swish_flat(flat).reshape(orig_shape)

    # Ragged size: kernel on the 128-aligned bulk, jnp on the < 128-elem tail.
    out_bulk = _h_swish_flat(flat[:bulk])
    out_tail = _h_swish_jnp(flat[bulk:])
    return jnp.concatenate([out_bulk, out_tail]).reshape(orig_shape)


if __name__ == "__main__":
    key = jax.random.PRNGKey(0)

    # NCHW input consistent with typical h_swish usage (MobileNetV3-style).
    x = jax.random.normal(key, (2, 4, 16, 16), dtype=jnp.float32) * 4.0
    y = jax.block_until_ready(h_swish(x))
    assert y.shape == x.shape and y.dtype == x.dtype
    assert jnp.allclose(y, _h_swish_jnp(x), atol=1e-6, rtol=1e-6)

    # Ragged element count (3*5*24*24 = 8640 = 67*128 + 64): bulk + tail path,
    # no full-tensor pad / slice.
    x2 = jax.random.normal(jax.random.PRNGKey(1), (3, 5, 24, 24),
                           dtype=jnp.float32) * 4.0
    y2 = jax.block_until_ready(h_swish(x2))
    assert y2.shape == x2.shape and y2.dtype == x2.dtype
    assert jnp.allclose(y2, _h_swish_jnp(x2), atol=1e-6, rtol=1e-6)

    # bf16 activations: exercises the sublane-16 rounding and in-kernel f32 math.
    x3 = (jax.random.normal(jax.random.PRNGKey(2), (2, 8, 32, 32),
                            dtype=jnp.float32) * 4.0).astype(jnp.bfloat16)
    y3 = jax.block_until_ready(h_swish(x3))
    assert y3.shape == x3.shape and y3.dtype == jnp.bfloat16
    assert jnp.allclose(y3.astype(jnp.float32),
                        _h_swish_jnp(x3).astype(jnp.float32),
                        rtol=2e-2, atol=2e-2)

    print("KERNEL_OK")
</pallas_src>

<mosaic_0001>
module attributes {stable_mosaic.version = 11 : i64} {
  func.func @_h_swish_kernel(%arg0: i32, %arg1: memref<2x1024xf32, #tpu.memory_space<vmem>>, %arg2: memref<2x1024xf32, #tpu.memory_space<vmem>>) attributes {dimension_semantics = [#tpu.dimension_semantics<parallel>], iteration_bounds = array<i64: 1>, scalar_prefetch = 0 : i64, scratch_operands = 0 : i64, tpu.core_type = #tpu.core_type<tc>, window_params = [{transform_indices = @transform_0, window_bounds = array<i64: 2, 1024>}, {transform_indices = @transform_1, window_bounds = array<i64: 2, 1024>}]} {
    %c0 = arith.constant 0 : index
    %c0_0 = arith.constant 0 : index
    %0 = vector.load %arg1[%c0, %c0_0] : memref<2x1024xf32, #tpu.memory_space<vmem>>, vector<2x1024xf32>
    %cst = arith.constant 3.000000e+00 : f32
    %1 = vector.broadcast %cst : f32 to vector<2x1024xf32>
    %2 = arith.addf %0, %1 : vector<2x1024xf32>
    %cst_1 = arith.constant 0.000000e+00 : f32
    %cst_2 = arith.constant 6.000000e+00 : f32
    %3 = vector.broadcast %cst_1 : f32 to vector<2x1024xf32>
    %4 = arith.maximumf %3, %2 : vector<2x1024xf32>
    %5 = vector.broadcast %cst_2 : f32 to vector<2x1024xf32>
    %6 = arith.minimumf %5, %4 : vector<2x1024xf32>
    %cst_3 = arith.constant 0.166666672 : f32
    %7 = vector.broadcast %cst_3 : f32 to vector<2x1024xf32>
    %8 = arith.mulf %6, %7 : vector<2x1024xf32>
    %9 = arith.mulf %0, %8 : vector<2x1024xf32>
    %c0_4 = arith.constant 0 : index
    %c0_5 = arith.constant 0 : index
    %10 = vector.load %arg2[%c0_4, %c0_5] : memref<2x1024xf32, #tpu.memory_space<vmem>>, vector<2x1024xf32>
    tpu.vector_store %arg2[%c0_4, %c0_5], %9 {strides = array<i32>} : memref<2x1024xf32, #tpu.memory_space<vmem>>, vector<2x1024xf32>,
    return
  }
  func.func @transform_0(%arg0: i32) -> (i32, i32) {
    %c0_i32 = arith.constant 0 : i32
    %c0_i32_0 = arith.constant 0 : i32
    return %arg0, %c0_i32 : i32, i32
  }
  func.func @transform_1(%arg0: i32) -> (i32, i32) {
    %c0_i32 = arith.constant 0 : i32
    %c0_i32_0 = arith.constant 0 : i32
    return %arg0, %c0_i32 : i32, i32
  }
}

</mosaic_0001>

<llo_original>
// kernel: tpu_custom_call.1
$region0: #{tpu_custom_call.1}
  #allocation0 [shape = 'u32[]', space=smem, size = 0x4, offset = 0x4, fixed_abs, tag = 'smem constant byte address 0x4 - core index']
  #allocation1 [shape = 'u32[144,128]{1,0:T(1,128)}', space=vmem, size = 0x12000, scoped, tag = 'internal scratch']
  %s0 = inlined_call_operand.hbm [shape: f32[2,1024], index: 0, kind: input, shape index: {}]
  %s1 = inlined_call_operand.hbm [shape: f32[2,1024], index: 1, kind: output, shape index: {}]
  %s2 = sld [smem:[#allocation0]]
  $region18: #{tpu_custom_call.1} parent=0
    _
  %s4 = ssub.s32 1, %s2
  %s5 = scalar_select 0, %s4, %s2
  $region1: #{tpu_custom_call.1} parent=0
    #allocation2 [shape = 'u8[8192]{0}', space=vmem, size = 0x2000, scoped, tag = 'input window, operand 0, single buffered']
    #allocation3 [shape = 's32[1]{0}', space=sflag, size = 0x4, scoped, tag = 'scoped memory for tpu_custom_call.1']
    #allocation4 [shape = 's32[1]{0}', space=sflag, size = 0x4, scoped, tag = 'scoped memory for tpu_custom_call.1']
    #allocation5 [shape = 'u8[8192]{0}', space=vmem, size = 0x2000, scoped, tag = 'output window, operand 0, single buffered']
    %6 = vsyncpa [#allocation3], 0
    %7 = vsyncpa [#allocation4], 0
    // Predicated region
    $region2: #{tpu_custom_call.1} parent=1 // pred_check
      _
    $region3: #{tpu_custom_call.1} parent=1 // pred_check_branch
      %9 = sbr.rel (0) target = $region5
    $region4: #{tpu_custom_call.1} parent=1 // pred_region
      %s11 = ssub.s32 256, 256
      %12 = vsyncadd [#allocation3], %s11
      %s14 = sshll.u32 [#allocation2], 4
      %s15 = int_to_ptr.vmem [resolvable:$true] %s14
      %17 = dma.hbm_to_vmem [thread:$0]  %s0, 256, %s15, [#allocation3]
    $region5: #{tpu_custom_call.1} parent=1 // pred_fallthru
      _
    // Predicated region
    $region6: #{tpu_custom_call.1} parent=1 // pred_check
      _
    $region7: #{tpu_custom_call.1} parent=1 // pred_check_branch
      %19 = sbr.rel (0) target = $region9
    $region8: #{tpu_custom_call.1} parent=1 // pred_region
      %20 = dma.done [#allocation3], 256
    $region9: #{tpu_custom_call.1} parent=1 // pred_fallthru
      _
    %v21 = vld [vmem:[#allocation2] sm:$0xff]
    %v22 = vld [vmem:[#allocation2 + $0x8] sm:$0xff]
    %v23 = vadd.f32 %v21, 3.0
    %v24 = vadd.f32 %v22, 3.0
    %v25 = vmax.f32 %v23, 0.0
    %v26 = vmax.f32 %v24, 0.0
    %v27 = vmin.f32 %v25, 6.0
    %v28 = vmin.f32 %v26, 6.0
    %v29 = vmul.f32 %v27, 0.16666667
    %v30 = vmul.f32 %v28, 0.16666667
    %v31 = vmul.f32 %v21, %v29
    %v32 = vmul.f32 %v22, %v30
    %33 = vst [vmem:[#allocation5] sm:$0xff] %v31
    %34 = vst [vmem:[#allocation5 + $0x8] sm:$0xff] %v32
    // Predicated region
    $region10: #{tpu_custom_call.1} parent=1 // pred_check
      _
    $region11: #{tpu_custom_call.1} parent=1 // pred_check_branch
      %36 = sbr.rel (0) target = $region13
    $region12: #{tpu_custom_call.1} parent=1 // pred_region
      %s38 = ssub.s32 256, 256
      %39 = vsyncadd [#allocation4], %s38
      %s41 = sshll.u32 [#allocation5], 4
      %s42 = int_to_ptr.vmem [resolvable:$true] %s41
      %44 = dma.vmem_to_hbm [thread:$0]  %s42, 256, %s1, [#allocation4]
    $region13: #{tpu_custom_call.1} parent=1 // pred_fallthru
      _
    // Predicated region
    $region14: #{tpu_custom_call.1} parent=1 // pred_check
      _
    $region15: #{tpu_custom_call.1} parent=1 // pred_check_branch
      %46 = sbr.rel (0) target = $region17
    $region16: #{tpu_custom_call.1} parent=1 // pred_region
      %47 = dma.done [#allocation4], 256
    $region17: #{tpu_custom_call.1} parent=1 // pred_fallthru
      _
    %48 = vsyncpa [#allocation3], 1
    %49 = vsyncpa [#allocation4], 1

</llo_original>
